<compile_context>
chip_gen: v5e
topology: v5e:2x2
jax: 0.10.0
libtpu: 0.0.40
codegen_flags: <defaults>
</compile_context>

<pallas_src>
import jax
import jax.numpy as jnp
from jax import lax
from jax.experimental import pallas as pl
from jax.experimental.pallas import tpu as pltpu

LANE = 128                 # TPU lane width; all feature dims are padded to this
WAUG = 2 * LANE            # fused projection width (values | skip | logits)
LOGIT_SRC_COL = WAUG - 2   # column holding  <W_src x, a_src>
LOGIT_DST_COL = WAUG - 1   # column holding  <W_dst x, a_dst>
SKIP_REAL_MAX = LANE - 2   # skip half keeps its last 2 lanes for the logits

# Keep both False for the 1e-4 verification below; flip True for production.
APPROX_RECIPROCAL = False  # EUP vrcp for the softmax denominator
AGG_IN_BF16 = False        # bf16 operands for the K=N aggregation matmul


def _make_gnn_kernel(tm: int, approx_recip: bool, agg_bf16: bool):
    """tm: destination-row tile size (static)."""

    def kernel(x_ref, adj_ref, w_ref, b_ref, out_ref,
               haug_ref, h1_ref, alsrc_ref):
        layer = pl.program_id(0)
        last_layer = pl.num_programs(0) - 1
        row = pl.program_id(1)

        # ---- once per layer (row tile 0): fused projection of ALL nodes ----
        # one 256-wide MXU pass -> [GAT values | Linear skip | src/dst logits]
        @pl.when(row == 0)
        def _project():
            def project_from(h_all):
                haug = jnp.dot(h_all, w_ref[...],
                               preferred_element_type=jnp.float32)   # [NP, 256]
                alsrc_ref[...] = haug[:, LOGIT_SRC_COL:LOGIT_SRC_COL + 1]
                haug_ref[...] = haug

            @pl.when(layer == 0)
            def _():
                project_from(x_ref[...])

            @pl.when(layer > 0)
            def _():
                project_from(h1_ref[...])

        # ---- per destination-row tile: attention + aggregation + skip ------
        r0 = pl.multiple_of(row * tm, tm)
        adjf = adj_ref[...].astype(jnp.float32)                 # [tm, NP] 0/1

        skip_raw = haug_ref[pl.ds(r0, tm), LANE:WAUG]           # [tm, 128] aligned
        al_dst = skip_raw[:, LANE - 1:LANE]                     # [tm, 1]
        al_src = jnp.transpose(alsrc_ref[...])                  # [1, NP] (tiny relayout)

        e = al_dst + al_src                                     # [tm, NP]
        e = jnp.maximum(e, 0.2 * e)                             # leaky_relu(0.2)
        e = jnp.where(adjf > 0.0, e, -1e30)                     # in-kernel edge mask
        m = jnp.max(e, axis=-1, keepdims=True)
        p = jnp.exp(e - m) * adjf                               # empty rows stay 0
        den = jnp.sum(p, axis=-1, keepdims=True)
        inv = jnp.where(den > 0.0,
                        pl.reciprocal(den, approx=approx_recip), 0.0)
        attn = p * inv                                          # [tm, NP]

        h_src = haug_ref[:, 0:LANE]                             # [NP, 128]; cols>=c are 0
        if agg_bf16:
            agg = jnp.dot(attn.astype(jnp.bfloat16),
                          h_src.astype(jnp.bfloat16),
                          preferred_element_type=jnp.float32)
        else:
            agg = jnp.dot(attn, h_src, preferred_element_type=jnp.float32)

        lane = lax.broadcasted_iota(jnp.int32, (1, LANE), 1)
        skip = skip_raw * (lane < SKIP_REAL_MAX).astype(jnp.float32)  # drop logit lanes
        new_h = agg + skip + b_ref[...]                         # [tm, 128]

        @pl.when(layer < last_layer)
        def _():
            h1_ref[pl.ds(r0, tm), :] = new_h                    # feed layer 2
            out_ref[...] = new_h                                # placeholder write

        @pl.when(layer == last_layer)
        def _():
            # F.normalize(x, dim=1): padded lanes are exactly zero, so the norm
            # over all 128 lanes equals the norm over the real channels.
            ss = jnp.sum(new_h * new_h, axis=1, keepdims=True)
            out_ref[...] = new_h * lax.rsqrt(jnp.maximum(ss, 1e-24))

    return kernel


def gnn_forward(x, adj, params, *, tm=None,
                approx_reciprocal=APPROX_RECIPROCAL, agg_bf16=AGG_IN_BF16):
    """Full forward pass in one row-tiled Pallas call."""
    n, f_in = x.shape
    c1 = params["w1s"].shape[1]
    c2 = params["w2s"].shape[1]
    assert f_in <= LANE and max(c1, c2) <= SKIP_REAL_MAX

    if tm is None:
        tm = 16 if n <= 512 else 256       # multiple of 16 -> bf16-tile friendly
    np_ = pl.cdiv(n, tm) * tm              # pad node count to a tile multiple
    n_tiles = np_ // tm

    # ---- wrapper-side preprocessing (plain JAX glue, outside the kernel) ----
    x_pad = jnp.zeros((np_, LANE), jnp.float32).at[:n, :f_in].set(x)
    adj_p = jnp.zeros((np_, np_), jnp.bfloat16).at[:n, :n].set(
        adj.astype(jnp.bfloat16))

    def prep_layer(ws, wd, a_s, a_d, b_gat, wl, b_lin):
        fi, c = ws.shape
        w = jnp.zeros((LANE, WAUG), jnp.float32)
        w = w.at[:fi, :c].set(ws)                              # GAT value projection
        w = w.at[:fi, LANE:LANE + c].set(wl)                   # Linear skip projection
        w = w.at[:fi, LOGIT_SRC_COL].set((ws @ a_s.T)[:, 0])   # <W_src x, a_src>
        w = w.at[:fi, LOGIT_DST_COL].set((wd @ a_d.T)[:, 0])   # <W_dst x, a_dst>
        b = jnp.zeros((1, LANE), jnp.float32).at[:, :c].set(b_gat + b_lin)
        return w, b

    w1, b1 = prep_layer(params["w1s"], params["w1d"], params["a1s"],
                        params["a1d"], params["b1"], params["wl1"], params["bl1"])
    w2, b2 = prep_layer(params["w2s"], params["w2d"], params["a2s"],
                        params["a2d"], params["b2"], params["wl2"], params["bl2"])
    W = jnp.stack([w1, w2])        # [2, 128, 256]  layer-selected by BlockSpec
    B = jnp.stack([b1, b2])        # [2, 1, 128]    GAT bias + Linear bias, folded

    grid = (2, n_tiles)            # (layer, destination-row tile)

    in_specs = [
        pl.BlockSpec((np_, LANE), lambda l, r: (0, 0)),              # x: resident
        pl.BlockSpec((tm, np_), lambda l, r: (r, 0)),                # adj row tile
        pl.BlockSpec((None, LANE, WAUG), lambda l, r: (l, 0, 0)),    # fused weights
        pl.BlockSpec((None, 1, LANE), lambda l, r: (l, 0, 0)),       # fused bias
    ]
    out_specs = pl.BlockSpec((tm, LANE), lambda l, r: (r, 0))
    scratch_shapes = [
        pltpu.VMEM((np_, WAUG), jnp.float32),   # fused projection of all nodes
        pltpu.VMEM((np_, LANE), jnp.float32),   # h1 (layer-1 out -> layer-2 in)
        pltpu.VMEM((np_, 1), jnp.float32),      # per-node source logits
    ]

    # Scoped-VMEM limit sized from the actual tiled footprint (+ headroom).
    vmem_bytes = (2 * np_ * LANE * 4            # x (double buffered)
                  + 2 * tm * np_ * 2            # adj tiles (bf16, double buffered)
                  + 2 * LANE * WAUG * 4         # weights
                  + 2 * LANE * 4                # bias
                  + 2 * tm * LANE * 4           # output tiles
                  + np_ * WAUG * 4              # haug scratch
                  + 2 * np_ * LANE * 4          # h1 + alsrc (lane-padded) scratch
                  + 8 * tm * np_ * 4)           # e / p / attn temporaries
    vmem_limit = int(min(64 * 1024 * 1024, 2 * vmem_bytes + (4 << 20)))

    flops = int(2 * (2 * np_ * LANE * WAUG + 2 * np_ * np_ * LANE))
    transcendentals = int(2 * np_ * np_ + 6 * np_)
    bytes_accessed = int(2 * np_ * np_ * 2 + 2 * np_ * LANE * 4
                         + 2 * LANE * WAUG * 4 + 2 * np_ * LANE * 4)

    out_pad = pl.pallas_call(
        _make_gnn_kernel(tm, approx_reciprocal, agg_bf16),
        out_shape=jax.ShapeDtypeStruct((np_, LANE), jnp.float32),
        grid_spec=pltpu.PrefetchScalarGridSpec(
            num_scalar_prefetch=0,
            grid=grid,
            in_specs=in_specs,
            out_specs=out_specs,
            scratch_shapes=scratch_shapes),
        compiler_params=pltpu.CompilerParams(
            dimension_semantics=("arbitrary", "arbitrary"),
            vmem_limit_bytes=vmem_limit),
        cost_estimate=pl.CostEstimate(flops=flops,
                                      transcendentals=transcendentals,
                                      bytes_accessed=bytes_accessed),
    )(x_pad, adj_p, W, B)
    return out_pad[:n, :c2]


def gnn_reference(x, adj, p):
    """Pure-JAX reference (unpadded, straightforward formulation)."""
    def gat(h, ws, wd, a_s, a_d, b):
        hs, hd = h @ ws, h @ wd
        e = jnp.sum(hd * a_d, -1, keepdims=True) + jnp.sum(hs * a_s, -1)[None, :]
        e = jnp.where(e > 0, e, 0.2 * e)
        e = jnp.where(adj > 0, e, -1e30)
        pmat = jnp.exp(e - e.max(-1, keepdims=True)) * adj
        den = pmat.sum(-1, keepdims=True)
        attn = pmat * jnp.where(den > 0, 1.0 / den, 0.0)
        return attn @ hs + b

    h1 = gat(x, p["w1s"], p["w1d"], p["a1s"], p["a1d"], p["b1"]) + x @ p["wl1"] + p["bl1"]
    h2 = gat(h1, p["w2s"], p["w2d"], p["a2s"], p["a2d"], p["b2"]) + h1 @ p["wl2"] + p["bl2"]
    nrm = jnp.maximum(jnp.sqrt(jnp.sum(h2 * h2, 1, keepdims=True)), 1e-12)
    return h2 / nrm


if __name__ == "__main__":
    N, F_IN = 32, 8
    HIDDEN1 = 32          # hidden_channels_1 * heads
    OUT1 = 16             # out_channels_1 * heads

    key = jax.random.PRNGKey(0)
    keys = jax.random.split(key, 20)

    x = jax.random.normal(keys[0], (N, F_IN), dtype=jnp.float32)

    # Deterministic edge_index [2, E]: ring edges + a few random extra edges.
    src_ring = jnp.arange(N, dtype=jnp.int32)
    dst_ring = (src_ring + 1) % N
    extra_src = jax.random.randint(keys[1], (48,), 0, N, dtype=jnp.int32)
    extra_dst = jax.random.randint(keys[2], (48,), 0, N, dtype=jnp.int32)
    edge_index = jnp.stack([jnp.concatenate([src_ring, extra_src]),
                            jnp.concatenate([dst_ring, extra_dst])], axis=0)
    # Dense adjacency mask: adj[dst, src] = 1 (host-side glue, outside the kernel).
    adj = jnp.zeros((N, N), jnp.float32).at[edge_index[1], edge_index[0]].set(1.0)

    def glorot(k, shape, scale=0.3):
        return scale * jax.random.normal(k, shape, dtype=jnp.float32)

    params = {
        # GATConv 1: W_src/W_dst [F_IN, HIDDEN1], att vectors [1, HIDDEN1], bias
        "w1s": glorot(keys[3], (F_IN, HIDDEN1)),
        "w1d": glorot(keys[4], (F_IN, HIDDEN1)),
        "a1s": glorot(keys[5], (1, HIDDEN1)),
        "a1d": glorot(keys[6], (1, HIDDEN1)),
        "b1":  glorot(keys[7], (1, HIDDEN1), 0.1),
        # Linear skip 1
        "wl1": glorot(keys[8], (F_IN, HIDDEN1)),
        "bl1": glorot(keys[9], (1, HIDDEN1), 0.1),
        # GATConv 2
        "w2s": glorot(keys[10], (HIDDEN1, OUT1)),
        "w2d": glorot(keys[11], (HIDDEN1, OUT1)),
        "a2s": glorot(keys[12], (1, OUT1)),
        "a2d": glorot(keys[13], (1, OUT1)),
        "b2":  glorot(keys[14], (1, OUT1), 0.1),
        # Linear skip 2
        "wl2": glorot(keys[15], (HIDDEN1, OUT1)),
        "bl2": glorot(keys[16], (1, OUT1), 0.1),
    }

    out = gnn_forward(x, adj, params)
    out = jax.block_until_ready(out)

    ref = gnn_reference(x, adj, params)
    assert out.shape == (N, OUT1)
    assert bool(jnp.all(jnp.isfinite(out)))
    assert bool(jnp.allclose(out, ref, atol=1e-4, rtol=1e-4))

    print("KERNEL_OK")
</pallas_src>

<mosaic_0001>
module attributes {stable_mosaic.version = 11 : i64} {
  func.func @kernel(%arg0: i32, %arg1: i32, %arg2: memref<32x128xf32, #tpu.memory_space<vmem>>, %arg3: memref<16x32xbf16, #tpu.memory_space<vmem>>, %arg4: memref<1x128x256xf32, #tpu.memory_space<vmem>>, %arg5: memref<1x1x128xf32, #tpu.memory_space<vmem>>, %arg6: memref<16x128xf32, #tpu.memory_space<vmem>>, %arg7: memref<32x256xf32, #tpu.memory_space<vmem>>, %arg8: memref<32x128xf32, #tpu.memory_space<vmem>>, %arg9: memref<32x1xf32, #tpu.memory_space<vmem>>) attributes {dimension_semantics = [#tpu.dimension_semantics<arbitrary>, #tpu.dimension_semantics<arbitrary>], iteration_bounds = array<i64: 2, 2>, scalar_prefetch = 0 : i64, scratch_operands = 3 : i64, tpu.core_type = #tpu.core_type<tc>, window_params = [{pipeline_mode = #tpu.pipeline_mode<synchronous>, transform_indices = @transform_0, window_bounds = array<i64: 32, 128>}, {transform_indices = @transform_1, window_bounds = array<i64: 16, 32>}, {transform_indices = @transform_2, window_bounds = array<i64: 1, 128, 256>}, {transform_indices = @transform_3, window_bounds = array<i64: 1, 1, 128>}, {transform_indices = @transform_4, window_bounds = array<i64: 16, 128>}]} {
    %c0_i32 = arith.constant 0 : i32
    %0 = arith.cmpi eq, %arg1, %c0_i32 : i32
    %1 = arith.extui %0 : i1 to i32
    %c0_i32_0 = arith.constant 0 : i32
    %2 = arith.cmpi ne, %1, %c0_i32_0 : i32
    scf.if %2 {
      %c0_i32_19 = arith.constant 0 : i32
      %57 = arith.cmpi eq, %arg0, %c0_i32_19 : i32
      %58 = arith.extui %57 : i1 to i32
      %c0_i32_20 = arith.constant 0 : i32
      %59 = arith.cmpi ne, %58, %c0_i32_20 : i32
      scf.if %59 {
        %c0_23 = arith.constant 0 : index
        %c0_24 = arith.constant 0 : index
        %63 = vector.load %arg2[%c0_23, %c0_24] : memref<32x128xf32, #tpu.memory_space<vmem>>, vector<32x128xf32>
        %c0_25 = arith.constant 0 : index
        %c0_26 = arith.constant 0 : index
        %c0_27 = arith.constant 0 : index
        %64 = vector.load %arg4[%c0_25, %c0_26, %c0_27] : memref<1x128x256xf32, #tpu.memory_space<vmem>>, vector<1x128x256xf32>
        %65 = vector.shape_cast %64 : vector<1x128x256xf32> to vector<128x256xf32>
        %cst_28 = arith.constant dense<0.000000e+00> : vector<32x256xf32>
        %66 = tpu.matmul %63, %65, %cst_28 {dimension_numbers = #tpu.dot_dimension_numbers<[1], [0], [0], [1], [0, 0, 1, 1], [], []>} : vector<32x128xf32>, vector<128x256xf32>, vector<32x256xf32> -> vector<32x256xf32>
        %67 = vector.extract_strided_slice %66 {offsets = [0, 254], sizes = [32, 1], strides = [1, 1]} : vector<32x256xf32> to vector<32x1xf32>
        %c0_29 = arith.constant 0 : index
        %c0_30 = arith.constant 0 : index
        %68 = vector.load %arg9[%c0_29, %c0_30] : memref<32x1xf32, #tpu.memory_space<vmem>>, vector<32x1xf32>
        tpu.vector_store %arg9[%c0_29, %c0_30], %67 {strides = array<i32>} : memref<32x1xf32, #tpu.memory_space<vmem>>, vector<32x1xf32>,
        %c0_31 = arith.constant 0 : index
        %c0_32 = arith.constant 0 : index
        %69 = vector.load %arg7[%c0_31, %c0_32] : memref<32x256xf32, #tpu.memory_space<vmem>>, vector<32x256xf32>
        tpu.vector_store %arg7[%c0_31, %c0_32], %66 {strides = array<i32>} : memref<32x256xf32, #tpu.memory_space<vmem>>, vector<32x256xf32>,
      } else {
      }
      %c0_i32_21 = arith.constant 0 : i32
      %60 = arith.cmpi sgt, %arg0, %c0_i32_21 : i32
      %61 = arith.extui %60 : i1 to i32
      %c0_i32_22 = arith.constant 0 : i32
      %62 = arith.cmpi ne, %61, %c0_i32_22 : i32
      scf.if %62 {
        %c0_23 = arith.constant 0 : index
        %c0_24 = arith.constant 0 : index
        %63 = vector.load %arg8[%c0_23, %c0_24] : memref<32x128xf32, #tpu.memory_space<vmem>>, vector<32x128xf32>
        %c0_25 = arith.constant 0 : index
        %c0_26 = arith.constant 0 : index
        %c0_27 = arith.constant 0 : index
        %64 = vector.load %arg4[%c0_25, %c0_26, %c0_27] : memref<1x128x256xf32, #tpu.memory_space<vmem>>, vector<1x128x256xf32>
        %65 = vector.shape_cast %64 : vector<1x128x256xf32> to vector<128x256xf32>
        %cst_28 = arith.constant dense<0.000000e+00> : vector<32x256xf32>
        %66 = tpu.matmul %63, %65, %cst_28 {dimension_numbers = #tpu.dot_dimension_numbers<[1], [0], [0], [1], [0, 0, 1, 1], [], []>} : vector<32x128xf32>, vector<128x256xf32>, vector<32x256xf32> -> vector<32x256xf32>
        %67 = vector.extract_strided_slice %66 {offsets = [0, 254], sizes = [32, 1], strides = [1, 1]} : vector<32x256xf32> to vector<32x1xf32>
        %c0_29 = arith.constant 0 : index
        %c0_30 = arith.constant 0 : index
        %68 = vector.load %arg9[%c0_29, %c0_30] : memref<32x1xf32, #tpu.memory_space<vmem>>, vector<32x1xf32>
        tpu.vector_store %arg9[%c0_29, %c0_30], %67 {strides = array<i32>} : memref<32x1xf32, #tpu.memory_space<vmem>>, vector<32x1xf32>,
        %c0_31 = arith.constant 0 : index
        %c0_32 = arith.constant 0 : index
        %69 = vector.load %arg7[%c0_31, %c0_32] : memref<32x256xf32, #tpu.memory_space<vmem>>, vector<32x256xf32>
        tpu.vector_store %arg7[%c0_31, %c0_32], %66 {strides = array<i32>} : memref<32x256xf32, #tpu.memory_space<vmem>>, vector<32x256xf32>,
      } else {
      }
    } else {
    }
    %c16_i32 = arith.constant 16 : i32
    %3 = arith.muli %arg1, %c16_i32 : i32
    %4 = tpu.assume_multiple %3, 16 : i32
    %c0 = arith.constant 0 : index
    %c0_1 = arith.constant 0 : index
    %5 = vector.load %arg3[%c0, %c0_1] : memref<16x32xbf16, #tpu.memory_space<vmem>>, vector<16x32xbf16>
    %6 = arith.extf %5 : vector<16x32xbf16> to vector<16x32xf32>
    %7 = arith.index_cast %4 : i32 to index
    %c128 = arith.constant 128 : index
    %8 = vector.load %arg7[%7, %c128] : memref<32x256xf32, #tpu.memory_space<vmem>>, vector<16x128xf32>
    %9 = vector.extract_strided_slice %8 {offsets = [0, 127], sizes = [16, 1], strides = [1, 1]} : vector<16x128xf32> to vector<16x1xf32>
    %c0_2 = arith.constant 0 : index
    %c0_3 = arith.constant 0 : index
    %10 = vector.load %arg9[%c0_2, %c0_3] : memref<32x1xf32, #tpu.memory_space<vmem>>, vector<32x1xf32>
    %11 = tpu.transpose %10, [1, 0] : vector<32x1xf32> -> vector<1x32xf32>
    %12 = vector.broadcast %9 : vector<16x1xf32> to vector<16x32xf32>
    %13 = vector.broadcast %11 : vector<1x32xf32> to vector<16x32xf32>
    %14 = arith.addf %12, %13 : vector<16x32xf32>
    %cst = arith.constant 2.000000e-01 : f32
    %15 = vector.broadcast %cst : f32 to vector<16x32xf32>
    %16 = arith.mulf %15, %14 : vector<16x32xf32>
    %17 = arith.maximumf %14, %16 : vector<16x32xf32>
    %cst_4 = arith.constant 0.000000e+00 : f32
    %18 = vector.broadcast %cst_4 : f32 to vector<16x32xf32>
    %19 = arith.cmpf ogt, %6, %18 : vector<16x32xf32>
    %cst_5 = arith.constant -1.000000e+30 : f32
    %20 = vector.broadcast %cst_5 : f32 to vector<16x32xf32>
    %21 = arith.select %19, %17, %20 : vector<16x32xi1>, vector<16x32xf32>
    %cst_6 = arith.constant dense<0xFF800000> : vector<16xf32>
    %22 = vector.multi_reduction <maximumf>, %21, %cst_6 [1] : vector<16x32xf32> to vector<16xf32>
    %23 = vector.shape_cast %22 : vector<16xf32> to vector<16x1xf32>
    %24 = vector.broadcast %23 : vector<16x1xf32> to vector<16x32xf32>
    %25 = arith.subf %21, %24 : vector<16x32xf32>
    %26 = math.exp %25 : vector<16x32xf32>
    %27 = arith.mulf %26, %6 : vector<16x32xf32>
    %cst_7 = arith.constant dense<0.000000e+00> : vector<16xf32>
    %28 = vector.multi_reduction <add>, %27, %cst_7 [1] : vector<16x32xf32> to vector<16xf32>
    %29 = vector.shape_cast %28 : vector<16xf32> to vector<16x1xf32>
    %cst_8 = arith.constant 0.000000e+00 : f32
    %30 = vector.broadcast %cst_8 : f32 to vector<16x1xf32>
    %31 = arith.cmpf ogt, %29, %30 : vector<16x1xf32>
    %32 = tpu.reciprocal %29 : vector<16x1xf32> -> vector<16x1xf32>
    %cst_9 = arith.constant 0.000000e+00 : f32
    %33 = vector.broadcast %cst_9 : f32 to vector<16x1xf32>
    %34 = arith.select %31, %32, %33 : vector<16x1xi1>, vector<16x1xf32>
    %35 = vector.broadcast %34 : vector<16x1xf32> to vector<16x32xf32>
    %36 = arith.mulf %27, %35 : vector<16x32xf32>
    %c0_10 = arith.constant 0 : index
    %c0_11 = arith.constant 0 : index
    %37 = vector.load %arg7[%c0_10, %c0_11] : memref<32x256xf32, #tpu.memory_space<vmem>>, vector<32x128xf32>
    %cst_12 = arith.constant dense<0.000000e+00> : vector<16x128xf32>
    %38 = tpu.matmul %36, %37, %cst_12 {dimension_numbers = #tpu.dot_dimension_numbers<[1], [0], [0], [1], [0, 0, 1, 1], [], []>} : vector<16x32xf32>, vector<32x128xf32>, vector<16x128xf32> -> vector<16x128xf32>
    %39 = tpu.iota {dimensions = array<i32: 1>} : vector<1x128xi32>
    %c126_i32 = arith.constant 126 : i32
    %40 = vector.broadcast %c126_i32 : i32 to vector<1x128xi32>
    %41 = arith.cmpi slt, %39, %40 : vector<1x128xi32>
    %42 = arith.extui %41 : vector<1x128xi1> to vector<1x128xi32>
    %43 = arith.sitofp %42 : vector<1x128xi32> to vector<1x128xf32>
    %44 = vector.broadcast %43 : vector<1x128xf32> to vector<16x128xf32>
    %45 = arith.mulf %8, %44 : vector<16x128xf32>
    %46 = arith.addf %38, %45 : vector<16x128xf32>
    %c0_13 = arith.constant 0 : index
    %c0_14 = arith.constant 0 : index
    %c0_15 = arith.constant 0 : index
    %47 = vector.load %arg5[%c0_13, %c0_14, %c0_15] : memref<1x1x128xf32, #tpu.memory_space<vmem>>, vector<1x1x128xf32>
    %48 = vector.shape_cast %47 : vector<1x1x128xf32> to vector<1x128xf32>
    %49 = vector.broadcast %48 : vector<1x128xf32> to vector<16x128xf32>
    %50 = arith.addf %46, %49 : vector<16x128xf32>
    %c1_i32 = arith.constant 1 : i32
    %51 = arith.cmpi slt, %arg0, %c1_i32 : i32
    %52 = arith.extui %51 : i1 to i32
    %c0_i32_16 = arith.constant 0 : i32
    %53 = arith.cmpi ne, %52, %c0_i32_16 : i32
    scf.if %53 {
      %57 = arith.index_cast %4 : i32 to index
      %c0_19 = arith.constant 0 : index
      %58 = vector.load %arg8[%57, %c0_19] : memref<32x128xf32, #tpu.memory_space<vmem>>, vector<16x128xf32>
      tpu.vector_store %arg8[%57, %c0_19], %50 {strides = array<i32>} : memref<32x128xf32, #tpu.memory_space<vmem>>, vector<16x128xf32>,
      %c0_20 = arith.constant 0 : index
      %c0_21 = arith.constant 0 : index
      %59 = vector.load %arg6[%c0_20, %c0_21] : memref<16x128xf32, #tpu.memory_space<vmem>>, vector<16x128xf32>
      tpu.vector_store %arg6[%c0_20, %c0_21], %50 {strides = array<i32>} : memref<16x128xf32, #tpu.memory_space<vmem>>, vector<16x128xf32>,
    } else {
    }
    %c1_i32_17 = arith.constant 1 : i32
    %54 = arith.cmpi eq, %arg0, %c1_i32_17 : i32
    %55 = arith.extui %54 : i1 to i32
    %c0_i32_18 = arith.constant 0 : i32
    %56 = arith.cmpi ne, %55, %c0_i32_18 : i32
    scf.if %56 {
      %57 = arith.mulf %50, %50 : vector<16x128xf32>
      %cst_19 = arith.constant dense<0.000000e+00> : vector<16xf32>
      %58 = vector.multi_reduction <add>, %57, %cst_19 [1] : vector<16x128xf32> to vector<16xf32>
      %59 = vector.shape_cast %58 : vector<16xf32> to vector<16x1xf32>
      %cst_20 = arith.constant 1.000000e-24 : f32
      %60 = vector.broadcast %cst_20 : f32 to vector<16x1xf32>
      %61 = arith.maximumf %59, %60 : vector<16x1xf32>
      %62 = math.rsqrt %61 : vector<16x1xf32>
      %63 = vector.broadcast %62 : vector<16x1xf32> to vector<16x128xf32>
      %64 = arith.mulf %50, %63 : vector<16x128xf32>
      %c0_21 = arith.constant 0 : index
      %c0_22 = arith.constant 0 : index
      %65 = vector.load %arg6[%c0_21, %c0_22] : memref<16x128xf32, #tpu.memory_space<vmem>>, vector<16x128xf32>
      tpu.vector_store %arg6[%c0_21, %c0_22], %64 {strides = array<i32>} : memref<16x128xf32, #tpu.memory_space<vmem>>, vector<16x128xf32>,
    } else {
    }
    return
  }
  func.func @transform_0(%arg0: i32, %arg1: i32) -> (i32, i32) {
    %c0_i32 = arith.constant 0 : i32
    %c0_i32_0 = arith.constant 0 : i32
    %c0_i32_1 = arith.constant 0 : i32
    return %c0_i32, %c0_i32_0 : i32, i32
  }
  func.func @transform_1(%arg0: i32, %arg1: i32) -> (i32, i32) {
    %c0_i32 = arith.constant 0 : i32
    %c0_i32_0 = arith.constant 0 : i32
    return %arg1, %c0_i32 : i32, i32
  }
  func.func @transform_2(%arg0: i32, %arg1: i32) -> (i32, i32, i32) {
    %c0_i32 = arith.constant 0 : i32
    %c0_i32_0 = arith.constant 0 : i32
    %c0_i32_1 = arith.constant 0 : i32
    return %arg0, %c0_i32, %c0_i32_0 : i32, i32, i32
  }
  func.func @transform_3(%arg0: i32, %arg1: i32) -> (i32, i32, i32) {
    %c0_i32 = arith.constant 0 : i32
    %c0_i32_0 = arith.constant 0 : i32
    %c0_i32_1 = arith.constant 0 : i32
    return %arg0, %c0_i32, %c0_i32_0 : i32, i32, i32
  }
  func.func @transform_4(%arg0: i32, %arg1: i32) -> (i32, i32) {
    %c0_i32 = arith.constant 0 : i32
    %c0_i32_0 = arith.constant 0 : i32
    return %arg1, %c0_i32 : i32, i32
  }
}

</mosaic_0001>

<llo_original>
// kernel: tpu_custom_call.1
$region0: #{tpu_custom_call.1}
  #allocation0 [shape = 'u32[]', space=smem, size = 0x4, offset = 0x4, fixed_abs, tag = 'smem constant byte address 0x4 - core index']
  #allocation1 [shape = 'u32[72,128]{1,0:T(1,128)}', space=vmem, size = 0x9000, scoped, tag = 'internal scratch']
  #allocation2 [shape = 'f32[32,256]{1,0:T(8,128)}', space=vmem, size = 0x8000, scoped, tag = 'scratch operand']
  #allocation3 [shape = 'f32[32,128]{1,0:T(8,128)}', space=vmem, size = 0x4000, scoped, tag = 'scratch operand']
  #allocation4 [shape = 'f32[32,1]{1,0:T(8,128)}', space=vmem, size = 0x4000, scoped, tag = 'scratch operand']
  %s0 = inlined_call_operand.hbm [shape: f32[32,128], index: 0, kind: input, shape index: {}]
  %s1 = inlined_call_operand.hbm [shape: bf16[32,32], index: 1, kind: input, shape index: {}]
  %s2 = inlined_call_operand.hbm [shape: f32[2,128,256], index: 2, kind: input, shape index: {}]
  %s3 = inlined_call_operand.vmem [shape: f32[2,1,128], index: 3, kind: input, shape index: {}]
  %s4 = inlined_call_operand.hbm [shape: f32[32,128], index: 4, kind: output, shape index: {}]
  %s5 = sld [smem:[#allocation0]]
  $region81: #{tpu_custom_call.1} parent=0
    _
  %s7 = ssub.s32 1, %s5
  %s8 = scalar_select 0, %s7, %s5
  $region1: #{tpu_custom_call.1} parent=0
    #allocation5 [shape = 'u8[16384]{0}', space=vmem, size = 0x4000, scoped, tag = 'input window, operand 0, single buffered']
    #allocation6 [shape = 's32[2]{0}', space=sflag, size = 0x8, scoped, tag = 'scoped memory for tpu_custom_call.1']
    #allocation7 [shape = 's32[2]{0}', space=sflag, size = 0x8, scoped, tag = 'scoped memory for tpu_custom_call.1']
    #allocation8 [shape = 'u8[8192]{0}', space=vmem, size = 0x2000, scoped, tag = 'input window, operand 1']
    #allocation9 [shape = 's32[2]{0}', space=sflag, size = 0x8, scoped, tag = 'scoped memory for tpu_custom_call.1']
    #allocation10 [shape = 'u8[262144]{0}', space=vmem, size = 0x40000, scoped, tag = 'input window, operand 2']
    #allocation11 [shape = 'u8[16384]{0}', space=vmem, size = 0x4000, scoped, tag = 'output window, operand 0']
    %9 = vsyncpa [#allocation6], 0
    %10 = vsyncpa [#allocation9], 0
    %s11 = scalar_lea.sflag [#allocation9], 1
    %12 = vsyncpa %s11, 0
    %13 = vsyncpa [#allocation7], 0
    %s14 = scalar_lea.sflag [#allocation7], 1
    %15 = vsyncpa %s14, 0
    loop: start=0, step=1, limit=6
    $region2: #{tpu_custom_call.1} parent=1 // loop_pre_header
      _
    $region3: #{tpu_custom_call.1} parent=1 // loop_header
      %s17 = sphi 0, %s21
      %p18 = scmp.ge.s32.totalorder %s17, 6
      %s24 = sphi 0, %s36
      %s25 = sphi 0, %s32
      %s26 = sphi 0, %s24
      %s27 = sphi 0, %s25
      %s28 = sphi 0, %s26
      %s29 = sphi 0, %s27
      %s37 = sphi 0, %s37
      %s39 = sphi 0, %s37
      %s40 = sphi 0, %s39
      %s54 = sphi 0, %s40
      %s60 = sphi 0, %s62
      %s63 = sphi 0, %s60
      %s64 = sphi 0, %s63
      %s80 = sphi 0, %s64
      %s86 = sphi 0, %s88
      %s89 = sphi 0, %s86
      %s90 = sphi 0, %s89
      %s106 = sphi 0, %s90
      %s112 = sphi 0, %s114
      %s115 = sphi 0, %s112
      %s116 = sphi 0, %s115
      %s132 = sphi 0, %s116
      %s138 = sphi 0, %s140
      %s141 = sphi 0, %s138
      %s142 = sphi 0, %s141
      %s158 = sphi 0, %s142
    $region4: #{tpu_custom_call.1} parent=1 // loop_header_branch
      %20 = sbr.rel (%p18) target = $region8
    $region5: #{tpu_custom_call.1} parent=1 // loop_body
      %s22 = ssub.s32 %s17, 1
      %s23 = ssub.s32 %s17, 2
      %s30 = sadd.s32 1, %s25
      %p31 = scmp.ge.s32.totalorder %s30, 2
      %s32 = scalar_select %p31, 0, %s30
      %s33 = sadd.s32 1, %s24
      %s34 = scalar_select %p31, %s33, %s24
      %p35 = scmp.ge.s32.totalorder %s34, 2
      %s36 = scalar_select %p35, 0, %s34
      %s38 = sadd.s32 %s37, 1
      %p41 = scmp.eq.s32.totalorder %s17, 3
      %p42 = scmp.ne.s32.totalorder %s37, %s39
      %p43 = scmp.eq.s32.totalorder %s17, 0
      %p44 = por %p42, %p43
      %p45 = scmp.ne.s32.totalorder %s37, %s39
      %p46 = scmp.eq.s32.totalorder %s22, 3
      %p47 = por %p45, %p46
      %p48 = scmp.ne.s32.totalorder %s39, %s40
      %p49 = scmp.eq.s32.totalorder %s22, 0
      %p50 = por %p48, %p49
      %p51 = scmp.ne.s32.totalorder %s39, %s40
      %p52 = scmp.eq.s32.totalorder %s23, 3
      %p53 = por %p51, %p52
      %p55 = scmp.ne.s32.totalorder %s40, %s54
      %p56 = scmp.eq.s32.totalorder %s23, 0
      %p57 = por %p55, %p56
      %s58 = ssub.s32 %s25, %s32
      %p59 = scmp.eq.s32.totalorder %s58, 0
      %s61 = sadd.s32 %s60, 1
      %s62 = scalar_select %p59, %s60, %s61
      %p65 = pneg %p59
      %p66 = scmp.eq.s32.totalorder %s17, 3
      %p67 = por %p65, %p66
      %p68 = scmp.ne.s32.totalorder %s60, %s63
      %p69 = scmp.eq.s32.totalorder %s17, 0
      %p70 = por %p68, %p69
      %p71 = scmp.ne.s32.totalorder %s60, %s63
      %p72 = scmp.eq.s32.totalorder %s22, 3
      %p73 = por %p71, %p72
      %p74 = scmp.ne.s32.totalorder %s63, %s64
      %p75 = scmp.eq.s32.totalorder %s22, 0
      %p76 = por %p74, %p75
      %p77 = scmp.ne.s32.totalorder %s63, %s64
      %p78 = scmp.eq.s32.totalorder %s23, 3
      %p79 = por %p77, %p78
      %p81 = scmp.ne.s32.totalorder %s64, %s80
      %p82 = scmp.eq.s32.totalorder %s23, 0
      %p83 = por %p81, %p82
      %s84 = ssub.s32 %s24, %s36
      %p85 = scmp.eq.s32.totalorder %s84, 0
      %s87 = sadd.s32 %s86, 1
      %s88 = scalar_select %p85, %s86, %s87
      %p91 = pneg %p85
      %p92 = scmp.eq.s32.totalorder %s17, 3
      %p93 = por %p91, %p92
      %p94 = scmp.ne.s32.totalorder %s86, %s89
      %p95 = scmp.eq.s32.totalorder %s17, 0
      %p96 = por %p94, %p95
      %p97 = scmp.ne.s32.totalorder %s86, %s89
      %p98 = scmp.eq.s32.totalorder %s22, 3
      %p99 = por %p97, %p98
      %p100 = scmp.ne.s32.totalorder %s89, %s90
      %p101 = scmp.eq.s32.totalorder %s22, 0
      %p102 = por %p100, %p101
      %p103 = scmp.ne.s32.totalorder %s89, %s90
      %p104 = scmp.eq.s32.totalorder %s23, 3
      %p105 = por %p103, %p104
      %p107 = scmp.ne.s32.totalorder %s90, %s106
      %p108 = scmp.eq.s32.totalorder %s23, 0
      %p109 = por %p107, %p108
      %s110 = ssub.s32 %s24, %s36
      %p111 = scmp.eq.s32.totalorder %s110, 0
      %s113 = sadd.s32 %s112, 1
      %s114 = scalar_select %p111, %s112, %s113
      %p117 = pneg %p111
      %p118 = scmp.eq.s32.totalorder %s17, 3
      %p119 = por %p117, %p118
      %p120 = scmp.ne.s32.totalorder %s112, %s115
      %p121 = scmp.eq.s32.totalorder %s17, 0
      %p122 = por %p120, %p121
      %p123 = scmp.ne.s32.totalorder %s112, %s115
      %p124 = scmp.eq.s32.totalorder %s22, 3
      %p125 = por %p123, %p124
      %p126 = scmp.ne.s32.totalorder %s115, %s116
      %p127 = scmp.eq.s32.totalorder %s22, 0
      %p128 = por %p126, %p127
      %p129 = scmp.ne.s32.totalorder %s115, %s116
      %p130 = scmp.eq.s32.totalorder %s23, 3
      %p131 = por %p129, %p130
      %p133 = scmp.ne.s32.totalorder %s116, %s132
      %p134 = scmp.eq.s32.totalorder %s23, 0
      %p135 = por %p133, %p134
      %s136 = ssub.s32 %s25, %s32
      %p137 = scmp.eq.s32.totalorder %s136, 0
      %s139 = sadd.s32 %s138, 1
      %s140 = scalar_select %p137, %s138, %s139
      %p143 = pneg %p137
      %p144 = scmp.eq.s32.totalorder %s17, 3
      %p145 = por %p143, %p144
      %p146 = scmp.ne.s32.totalorder %s138, %s141
      %p147 = scmp.eq.s32.totalorder %s17, 0
      %p148 = por %p146, %p147
      %p149 = scmp.ne.s32.totalorder %s138, %s141
      %p150 = scmp.eq.s32.totalorder %s22, 3
      %p151 = por %p149, %p150
      %p152 = scmp.ne.s32.totalorder %s141, %s142
      %p153 = scmp.eq.s32.totalorder %s22, 0
      %p154 = por %p152, %p153
      %p155 = scmp.ne.s32.totalorder %s141, %s142
      %p156 = scmp.eq.s32.totalorder %s23, 3
      %p157 = por %p155, %p156
      %p159 = scmp.ne.s32.totalorder %s142, %s158
      %p160 = scmp.eq.s32.totalorder %s23, 0
      %p161 = por %p159, %p160
      %p162 = scmp.le.s32.totalorder 1, %s17
      %p163 = scmp.lt.s32.totalorder %s17, 5
      %p164 = pnand %p162, %p163
      %p165 = pneg %p164
      // Predicated region
      $region9: #{tpu_custom_call.1} parent=5 // pred_check
        _
      $region10: #{tpu_custom_call.1} parent=5 // pred_check_branch
        %167 = sbr.rel (%p164) target = $region12
      $region11: #{tpu_custom_call.1} parent=5 // pred_region
        %s168 = ssub.s32 %s17, 1
        // Predicated region
        $region13: #{tpu_custom_call.1} parent=11 // pred_check
          %p169 = pneg %p50
        $region14: #{tpu_custom_call.1} parent=11 // pred_check_branch
          %171 = sbr.rel (%p169) target = $region16
        $region15: #{tpu_custom_call.1} parent=11 // pred_region
          %173 = vsyncadd [#allocation6], 0
          %s174 = sshll.u32 %s0, 4
          %s175 = int_to_ptr.hbm [resolvable:$true] %s174
          %s176 = sshll.u32 [#allocation5], 4
          %s177 = int_to_ptr.vmem [resolvable:$true] %s176
          %182 = dma.hbm_to_vmem [thread:$0]  %s175, 512, %s177, [#allocation6], 128, 128, 8
        $region16: #{tpu_custom_call.1} parent=11 // pred_fallthru
          _
      $region12: #{tpu_custom_call.1} parent=5 // pred_fallthru
        _
      %p183 = scmp.lt.s32.totalorder %s17, 4
      // Predicated region
      $region17: #{tpu_custom_call.1} parent=5 // pred_check
        %p184 = pneg %p183
      $region18: #{tpu_custom_call.1} parent=5 // pred_check_branch
        %186 = sbr.rel (%p184) target = $region20
      $region19: #{tpu_custom_call.1} parent=5 // pred_region
        // Predicated region
        $region21: #{tpu_custom_call.1} parent=19 // pred_check
          %p187 = pneg %p70
        $region22: #{tpu_custom_call.1} parent=19 // pred_check_branch
          %189 = sbr.rel (%p187) target = $region24
        $region23: #{tpu_custom_call.1} parent=19 // pred_region
          %s190 = sand.u32 %s17, 1
          %s191 = scalar_lea.sflag [#allocation9], %s190
          %s192 = sand.u32 %s60, 1
          %s193 = smul.addr %s192, 8
          %s194 = scalar_lea.vmem [#allocation8], %s193
          %s195 = smul.u32 2, %s25
          %197 = vsyncadd %s191, 0
          %s198 = smul.addr %s195, 4
          %s199 = scalar_lea.hbm %s1, %s198
          %s200 = sshll.u32 %s199, 4
          %s201 = int_to_ptr.hbm [resolvable:$true] %s200
          %s202 = sshll.u32 %s194, 4
          %s203 = int_to_ptr.vmem [resolvable:$true] %s202
          %208 = dma.hbm_to_vmem [thread:$0]  %s201, 128, %s203, %s191, 64, 64, 4
        $region24: #{tpu_custom_call.1} parent=19 // pred_fallthru
          _
        // Predicated region
        $region25: #{tpu_custom_call.1} parent=19 // pred_check
          %p209 = pneg %p96
        $region26: #{tpu_custom_call.1} parent=19 // pred_check_branch
          %211 = sbr.rel (%p209) target = $region28
        $region27: #{tpu_custom_call.1} parent=19 // pred_region
          %s212 = sand.u32 %s17, 1
          %s213 = scalar_lea.sflag [#allocation9], %s212
          %s214 = sand.u32 %s86, 1
          %s215 = smul.addr %s214, 256
          %s216 = scalar_lea.vmem [#allocation10], %s215
          %218 = vsyncadd %s213, 0
          %s219 = smul.addr %s24, 32
          %s220 = smul.addr %s219, 8
          %s221 = scalar_lea.hbm %s2, %s220
          %s222 = sshll.u32 %s221, 4
          %s223 = int_to_ptr.hbm [resolvable:$true] %s222
          %s224 = sshll.u32 %s216, 4
          %s225 = int_to_ptr.vmem [resolvable:$true] %s224
          %230 = dma.hbm_to_vmem [thread:$0]  %s223, 4096, %s225, %s213, 256, 256, 16
        $region28: #{tpu_custom_call.1} parent=19 // pred_fallthru
          _
        // Predicated region
        $region29: #{tpu_custom_call.1} parent=19 // pred_check
          %p231 = pneg %p122
        $region30: #{tpu_custom_call.1} parent=19 // pred_check_branch
          %233 = sbr.rel (%p231) target = $region32
        $region31: #{tpu_custom_call.1} parent=19 // pred_region
          %p234 = scmp.lt.s32.totalorder %s24, 1
          %s235 = scalar_select %p234, %s24, 1
          %s236 = scalar_lea.vmem %s3, %s235
        $region32: #{tpu_custom_call.1} parent=19 // pred_fallthru
          _
      $region20: #{tpu_custom_call.1} parent=5 // pred_fallthru
        _
      %p237 = scmp.le.s32.totalorder 1, %s17
      %p238 = scmp.lt.s32.totalorder %s17, 5
      %p239 = pnand %p237, %p238
      %p240 = pneg %p239
      // Predicated region
      $region33: #{tpu_custom_call.1} parent=5 // pred_check
        _
      $region34: #{tpu_custom_call.1} parent=5 // pred_check_branch
        %242 = sbr.rel (%p239) target = $region36
      $region35: #{tpu_custom_call.1} parent=5 // pred_region
        %s243 = ssub.s32 %s17, 1
        // Predicated region
        $region37: #{tpu_custom_call.1} parent=35 // pred_check
          %p244 = pneg %p50
        $region38: #{tpu_custom_call.1} parent=35 // pred_check_branch
          %246 = sbr.rel (%p244) target = $region40
        $region39: #{tpu_custom_call.1} parent=35 // pred_region
          %248 = dma.done [#allocation6], 512
        $region40: #{tpu_custom_call.1} parent=35 // pred_fallthru
          _
        %s249 = sand.u32 %s22, 1
        %s250 = scalar_lea.sflag [#allocation9], %s249
        %s251 = sand.u32 %s63, 1
        %s252 = smul.addr %s251, 8
        %s253 = scalar_lea.vmem [#allocation8], %s252
        // Predicated region
        $region41: #{tpu_custom_call.1} parent=35 // pred_check
          %p254 = pneg %p76
        $region42: #{tpu_custom_call.1} parent=35 // pred_check_branch
          %256 = sbr.rel (%p254) target = $region44
        $region43: #{tpu_custom_call.1} parent=35 // pred_region
          %258 = dma.done %s250, 128
        $region44: #{tpu_custom_call.1} parent=35 // pred_fallthru
          _
        %s259 = sand.u32 %s22, 1
        %s260 = scalar_lea.sflag [#allocation9], %s259
        %s261 = sand.u32 %s89, 1
        %s262 = smul.addr %s261, 256
        %s263 = scalar_lea.vmem [#allocation10], %s262
        // Predicated region
        $region45: #{tpu_custom_call.1} parent=35 // pred_check
          %p264 = pneg %p102
        $region46: #{tpu_custom_call.1} parent=35 // pred_check_branch
          %266 = sbr.rel (%p264) target = $region48
        $region47: #{tpu_custom_call.1} parent=35 // pred_region
          %268 = dma.done %s260, 4096
        $region48: #{tpu_custom_call.1} parent=35 // pred_fallthru
          _
        %p269 = pneg %p50
        %p270 = pneg %p47
        %s271 = sand.u32 %s22, 1
        %s272 = scalar_lea.sflag [#allocation9], %s271
        %s273 = sand.u32 %s63, 1
        %s274 = smul.addr %s273, 8
        %s275 = scalar_lea.vmem [#allocation8], %s274
        %p276 = pneg %p76
        %p277 = pneg %p73
        %s278 = sand.u32 %s22, 1
        %s279 = scalar_lea.sflag [#allocation9], %s278
        %s280 = sand.u32 %s89, 1
        %s281 = smul.addr %s280, 256
        %s282 = scalar_lea.vmem [#allocation10], %s281
        %p283 = pneg %p102
        %p284 = pneg %p99
        %p285 = scmp.lt.s32.totalorder %s26, 1
        %s286 = scalar_select %p285, %s26, 1
        %s287 = scalar_lea.vmem %s3, %s286
        %p288 = pneg %p128
        %p289 = pneg %p125
        %p290 = pneg %p154
        %p291 = pneg %p151
        %s292 = sand.u32 %s141, 1
        %s293 = scalar_lea.sflag [#allocation7], %s292
        %s294 = sand.u32 %s141, 1
        %s295 = smul.addr %s294, 16
        %s296 = scalar_lea.vmem [#allocation11], %s295
        %s297 = smul.u32 2, %s27
        %p298 = scmp.lt.s32.totalorder %s26, 1
        %s299 = scalar_select %p298, %s26, 1
        %s300 = scalar_lea.vmem %s3, %s299
        %s301 = smul.u32 2, %s27
        %p302 = scmp.eq.s32.totalorder %s27, 0
        // Predicated region
        $region49: #{tpu_custom_call.1} parent=35 // pred_check
          %p303 = pneg %p302
        $region50: #{tpu_custom_call.1} parent=35 // pred_check_branch
          %305 = sbr.rel (%p303) target = $region52
        $region51: #{tpu_custom_call.1} parent=35 // pred_region
          %p306 = scmp.eq.s32.totalorder %s26, 0
          // Predicated region
          $region53: #{tpu_custom_call.1} parent=51 // pred_check
            %p307 = pneg %p306
          $region54: #{tpu_custom_call.1} parent=51 // pred_check_branch
            %309 = sbr.rel (%p307) target = $region56
          $region55: #{tpu_custom_call.1} parent=51 // pred_region
            %v310 = vld [vmem:[#allocation5] sm:$0xff]
            %v311 = vld [vmem:[#allocation5 + $0x8] sm:$0xff]
            %v312 = vld [vmem:[#allocation5 + $0x10] sm:$0xff]
            %v313 = vld [vmem:[#allocation5 + $0x18] sm:$0xff]
            %v314 = vld [vmem:[%s263] sm:$0xff]
            %v315 = vld [vmem:[%s263 + $0x8] sm:$0xff]
            %v316 = vld [vmem:[%s263 + $0x10] sm:$0xff]
            %v317 = vld [vmem:[%s263 + $0x18] sm:$0xff]
            %v318 = vld [vmem:[%s263 + $0x20] sm:$0xff]
            %v319 = vld [vmem:[%s263 + $0x28] sm:$0xff]
            %v320 = vld [vmem:[%s263 + $0x30] sm:$0xff]
            %v321 = vld [vmem:[%s263 + $0x38] sm:$0xff]
            %v322 = vld [vmem:[%s263 + $0x40] sm:$0xff]
            %v323 = vld [vmem:[%s263 + $0x48] sm:$0xff]
            %v324 = vld [vmem:[%s263 + $0x50] sm:$0xff]
            %v325 = vld [vmem:[%s263 + $0x58] sm:$0xff]
            %v326 = vld [vmem:[%s263 + $0x60] sm:$0xff]
            %v327 = vld [vmem:[%s263 + $0x68] sm:$0xff]
            %v328 = vld [vmem:[%s263 + $0x70] sm:$0xff]
            %v329 = vld [vmem:[%s263 + $0x78] sm:$0xff]
            %v330 = vld [vmem:[%s263 + $0x80] sm:$0xff]
            %v331 = vld [vmem:[%s263 + $0x88] sm:$0xff]
            %v332 = vld [vmem:[%s263 + $0x90] sm:$0xff]
            %v333 = vld [vmem:[%s263 + $0x98] sm:$0xff]
            %v334 = vld [vmem:[%s263 + $0xa0] sm:$0xff]
            %v335 = vld [vmem:[%s263 + $0xa8] sm:$0xff]
            %v336 = vld [vmem:[%s263 + $0xb0] sm:$0xff]
            %v337 = vld [vmem:[%s263 + $0xb8] sm:$0xff]
            %v338 = vld [vmem:[%s263 + $0xc0] sm:$0xff]
            %v339 = vld [vmem:[%s263 + $0xc8] sm:$0xff]
            %v340 = vld [vmem:[%s263 + $0xd0] sm:$0xff]
            %v341 = vld [vmem:[%s263 + $0xd8] sm:$0xff]
            %v342 = vld [vmem:[%s263 + $0xe0] sm:$0xff]
            %v343 = vld [vmem:[%s263 + $0xe8] sm:$0xff]
            %v344 = vld [vmem:[%s263 + $0xf0] sm:$0xff]
            %v345 = vld [vmem:[%s263 + $0xf8] sm:$0xff]
            %346 = vmatpush.msra.mxu0 %v344
            %347 = vmatpush.msra.mxu0 %v342
            %348 = vmatpush.msra.mxu0 %v340
            %349 = vmatpush.msra.mxu0 %v338
            %350 = vmatpush.msra.mxu0 %v336
            %351 = vmatpush.msra.mxu0 %v334
            %352 = vmatpush.msra.mxu0 %v332
            %353 = vmatpush.msra.mxu0 %v330
            %354 = vmatpush.msra.mxu0 %v328
            %355 = vmatpush.msra.mxu0 %v326
            %356 = vmatpush.msra.mxu0 %v324
            %357 = vmatpush.msra.mxu0 %v322
            %358 = vmatpush.msra.mxu0 %v320
            %359 = vmatpush.msra.mxu0 %v318
            %360 = vmatpush.msra.mxu0 %v316
            %361 = vmatpush.msra.mxu0 %v314
            %362 = vmatmul.f32.gmra.mxu0 %v310
            %v363 = vpop.f32.mrf.mxu0
            %v364 = vadd.f32 0.0, %v363
            %365 = vmatmul.f32.gmra.mxu0 %v311
            %v366 = vpop.f32.mrf.mxu0
            %v367 = vadd.f32 0.0, %v366
            %368 = vmatmul.f32.gmra.mxu0 %v312
            %v369 = vpop.f32.mrf.mxu0
            %v370 = vadd.f32 0.0, %v369
            %371 = vmatmul.f32.gmra.mxu0 %v313
            %v372 = vpop.f32.mrf.mxu0
            %v373 = vadd.f32 0.0, %v372
            %374 = vdwg.mxu0
            %375 = vmatpush.msra.mxu0 %v345
            %376 = vmatpush.msra.mxu0 %v343
            %377 = vmatpush.msra.mxu0 %v341
            %378 = vmatpush.msra.mxu0 %v339
            %379 = vmatpush.msra.mxu0 %v337
            %380 = vmatpush.msra.mxu0 %v335
            %381 = vmatpush.msra.mxu0 %v333
            %382 = vmatpush.msra.mxu0 %v331
            %383 = vmatpush.msra.mxu0 %v329
            %384 = vmatpush.msra.mxu0 %v327
            %385 = vmatpush.msra.mxu0 %v325
            %386 = vmatpush.msra.mxu0 %v323
            %387 = vmatpush.msra.mxu0 %v321
            %388 = vmatpush.msra.mxu0 %v319
            %389 = vmatpush.msra.mxu0 %v317
            %390 = vmatpush.msra.mxu0 %v315
            %391 = vmatmul.f32.gmra.mxu0 %v310
            %v392 = vpop.f32.mrf.mxu0
            %v393 = vadd.f32 0.0, %v392
            %394 = vmatmul.f32.gmra.mxu0 %v311
            %v395 = vpop.f32.mrf.mxu0
            %v396 = vadd.f32 0.0, %v395
            %397 = vmatmul.f32.gmra.mxu0 %v312
            %v398 = vpop.f32.mrf.mxu0
            %v399 = vadd.f32 0.0, %v398
            %400 = vmatmul.f32.gmra.mxu0 %v313
            %v401 = vpop.f32.mrf.mxu0
            %v402 = vadd.f32 0.0, %v401
            %403 = vdwg.mxu0
            %408 = vrot.lane.b32.xlu0 %v393, 2
            %v409 = vpop.permute.xlu0 %408
            %410 = vrot.lane.b32.xlu0 %v396, 2
            %v411 = vpop.permute.xlu0 %410
            %412 = vrot.lane.b32.xlu0 %v399, 2
            %v413 = vpop.permute.xlu0 %412
            %414 = vrot.lane.b32.xlu0 %v402, 2
            %v415 = vpop.permute.xlu0 %414
            %vm420 = vcmask 7168
            %421 = vst.msk [vmem:[#allocation4] sm:$0xff] %vm420, %v409
            %422 = vst.msk [vmem:[#allocation4 + $0x8] sm:$0xff] %vm420, %v411
            %423 = vst.msk [vmem:[#allocation4 + $0x10] sm:$0xff] %vm420, %v413
            %424 = vst.msk [vmem:[#allocation4 + $0x18] sm:$0xff] %vm420, %v415
            %425 = vst [vmem:[#allocation2] sm:$0xff] %v364
            %426 = vst [vmem:[#allocation2 + $0x8] sm:$0xff] %v393
            %427 = vst [vmem:[#allocation2 + $0x10] sm:$0xff] %v367
            %428 = vst [vmem:[#allocation2 + $0x18] sm:$0xff] %v396
            %429 = vst [vmem:[#allocation2 + $0x20] sm:$0xff] %v370
            %430 = vst [vmem:[#allocation2 + $0x28] sm:$0xff] %v399
            %431 = vst [vmem:[#allocation2 + $0x30] sm:$0xff] %v373
            %432 = vst [vmem:[#allocation2 + $0x38] sm:$0xff] %v402
          $region56: #{tpu_custom_call.1} parent=51 // pred_fallthru
            _
          %p433 = scmp.gt.s32.totalorder %s26, 0
          // Predicated region
          $region57: #{tpu_custom_call.1} parent=51 // pred_check
            %p434 = pneg %p433
          $region58: #{tpu_custom_call.1} parent=51 // pred_check_branch
            %436 = sbr.rel (%p434) target = $region60
          $region59: #{tpu_custom_call.1} parent=51 // pred_region
            %v437 = vld [vmem:[#allocation3] sm:$0xff]
            %v438 = vld [vmem:[#allocation3 + $0x8] sm:$0xff]
            %v439 = vld [vmem:[#allocation3 + $0x10] sm:$0xff]
            %v440 = vld [vmem:[#allocation3 + $0x18] sm:$0xff]
            %v441 = vld [vmem:[%s263] sm:$0xff]
            %v442 = vld [vmem:[%s263 + $0x8] sm:$0xff]
            %v443 = vld [vmem:[%s263 + $0x10] sm:$0xff]
            %v444 = vld [vmem:[%s263 + $0x18] sm:$0xff]
            %v445 = vld [vmem:[%s263 + $0x20] sm:$0xff]
            %v446 = vld [vmem:[%s263 + $0x28] sm:$0xff]
            %v447 = vld [vmem:[%s263 + $0x30] sm:$0xff]
            %v448 = vld [vmem:[%s263 + $0x38] sm:$0xff]
            %v449 = vld [vmem:[%s263 + $0x40] sm:$0xff]
            %v450 = vld [vmem:[%s263 + $0x48] sm:$0xff]
            %v451 = vld [vmem:[%s263 + $0x50] sm:$0xff]
            %v452 = vld [vmem:[%s263 + $0x58] sm:$0xff]
            %v453 = vld [vmem:[%s263 + $0x60] sm:$0xff]
            %v454 = vld [vmem:[%s263 + $0x68] sm:$0xff]
            %v455 = vld [vmem:[%s263 + $0x70] sm:$0xff]
            %v456 = vld [vmem:[%s263 + $0x78] sm:$0xff]
            %v457 = vld [vmem:[%s263 + $0x80] sm:$0xff]
            %v458 = vld [vmem:[%s263 + $0x88] sm:$0xff]
            %v459 = vld [vmem:[%s263 + $0x90] sm:$0xff]
            %v460 = vld [vmem:[%s263 + $0x98] sm:$0xff]
            %v461 = vld [vmem:[%s263 + $0xa0] sm:$0xff]
            %v462 = vld [vmem:[%s263 + $0xa8] sm:$0xff]
            %v463 = vld [vmem:[%s263 + $0xb0] sm:$0xff]
            %v464 = vld [vmem:[%s263 + $0xb8] sm:$0xff]
            %v465 = vld [vmem:[%s263 + $0xc0] sm:$0xff]
            %v466 = vld [vmem:[%s263 + $0xc8] sm:$0xff]
            %v467 = vld [vmem:[%s263 + $0xd0] sm:$0xff]
            %v468 = vld [vmem:[%s263 + $0xd8] sm:$0xff]
            %v469 = vld [vmem:[%s263 + $0xe0] sm:$0xff]
            %v470 = vld [vmem:[%s263 + $0xe8] sm:$0xff]
            %v471 = vld [vmem:[%s263 + $0xf0] sm:$0xff]
            %v472 = vld [vmem:[%s263 + $0xf8] sm:$0xff]
            %473 = vmatpush.msra.mxu0 %v471
            %474 = vmatpush.msra.mxu0 %v469
            %475 = vmatpush.msra.mxu0 %v467
            %476 = vmatpush.msra.mxu0 %v465
            %477 = vmatpush.msra.mxu0 %v463
            %478 = vmatpush.msra.mxu0 %v461
            %479 = vmatpush.msra.mxu0 %v459
            %480 = vmatpush.msra.mxu0 %v457
            %481 = vmatpush.msra.mxu0 %v455
            %482 = vmatpush.msra.mxu0 %v453
            %483 = vmatpush.msra.mxu0 %v451
            %484 = vmatpush.msra.mxu0 %v449
            %485 = vmatpush.msra.mxu0 %v447
            %486 = vmatpush.msra.mxu0 %v445
            %487 = vmatpush.msra.mxu0 %v443
            %488 = vmatpush.msra.mxu0 %v441
            %489 = vmatmul.f32.gmra.mxu0 %v437
            %v490 = vpop.f32.mrf.mxu0
            %v491 = vadd.f32 0.0, %v490
            %492 = vmatmul.f32.gmra.mxu0 %v438
            %v493 = vpop.f32.mrf.mxu0
            %v494 = vadd.f32 0.0, %v493
            %495 = vmatmul.f32.gmra.mxu0 %v439
            %v496 = vpop.f32.mrf.mxu0
            %v497 = vadd.f32 0.0, %v496
            %498 = vmatmul.f32.gmra.mxu0 %v440
            %v499 = vpop.f32.mrf.mxu0
            %v500 = vadd.f32 0.0, %v499
            %501 = vdwg.mxu0
            %502 = vmatpush.msra.mxu0 %v472
            %503 = vmatpush.msra.mxu0 %v470
            %504 = vmatpush.msra.mxu0 %v468
            %505 = vmatpush.msra.mxu0 %v466
            %506 = vmatpush.msra.mxu0 %v464
            %507 = vmatpush.msra.mxu0 %v462
            %508 = vmatpush.msra.mxu0 %v460
            %509 = vmatpush.msra.mxu0 %v458
            %510 = vmatpush.msra.mxu0 %v456
            %511 = vmatpush.msra.mxu0 %v454
            %512 = vmatpush.msra.mxu0 %v452
            %513 = vmatpush.msra.mxu0 %v450
            %514 = vmatpush.msra.mxu0 %v448
            %515 = vmatpush.msra.mxu0 %v446
            %516 = vmatpush.msra.mxu0 %v444
            %517 = vmatpush.msra.mxu0 %v442
            %518 = vmatmul.f32.gmra.mxu0 %v437
            %v519 = vpop.f32.mrf.mxu0
            %v520 = vadd.f32 0.0, %v519
            %521 = vmatmul.f32.gmra.mxu0 %v438
            %v522 = vpop.f32.mrf.mxu0
            %v523 = vadd.f32 0.0, %v522
            %524 = vmatmul.f32.gmra.mxu0 %v439
            %v525 = vpop.f32.mrf.mxu0
            %v526 = vadd.f32 0.0, %v525
            %527 = vmatmul.f32.gmra.mxu0 %v440
            %v528 = vpop.f32.mrf.mxu0
            %v529 = vadd.f32 0.0, %v528
            %530 = vdwg.mxu0
            %535 = vrot.lane.b32.xlu0 %v520, 2
            %v536 = vpop.permute.xlu0 %535
            %537 = vrot.lane.b32.xlu0 %v523, 2
            %v538 = vpop.permute.xlu0 %537
            %539 = vrot.lane.b32.xlu0 %v526, 2
            %v540 = vpop.permute.xlu0 %539
            %541 = vrot.lane.b32.xlu0 %v529, 2
            %v542 = vpop.permute.xlu0 %541
            %vm547 = vcmask 7168
            %548 = vst.msk [vmem:[#allocation4] sm:$0xff] %vm547, %v536
            %549 = vst.msk [vmem:[#allocation4 + $0x8] sm:$0xff] %vm547, %v538
            %550 = vst.msk [vmem:[#allocation4 + $0x10] sm:$0xff] %vm547, %v540
            %551 = vst.msk [vmem:[#allocation4 + $0x18] sm:$0xff] %vm547, %v542
            %552 = vst [vmem:[#allocation2] sm:$0xff] %v491
            %553 = vst [vmem:[#allocation2 + $0x8] sm:$0xff] %v520
            %554 = vst [vmem:[#allocation2 + $0x10] sm:$0xff] %v494
            %555 = vst [vmem:[#allocation2 + $0x18] sm:$0xff] %v523
            %556 = vst [vmem:[#allocation2 + $0x20] sm:$0xff] %v497
            %557 = vst [vmem:[#allocation2 + $0x28] sm:$0xff] %v526
            %558 = vst [vmem:[#allocation2 + $0x30] sm:$0xff] %v500
            %559 = vst [vmem:[#allocation2 + $0x38] sm:$0xff] %v529
          $region60: #{tpu_custom_call.1} parent=51 // pred_fallthru
            _
        $region52: #{tpu_custom_call.1} parent=35 // pred_fallthru
          _
        %s560 = smul.u32 %s27, 16
        %v561 = vld [vmem:[%s253] sm:$0xf]
        %v562 = vld [vmem:[%s253 + $0x4] sm:$0xf]
        %v563 = vunpack.c.l.bf16 %v561
        %v564 = vunpack.c.l.bf16 %v562
        %s565 = sshra.s32 %s560, 3
        %s566 = sand.u32 %s560, 7
        %s567 = smul.u32 %s565, 2
        %s568 = smul.addr %s567, 8
        %s569 = scalar_lea.vmem [#allocation2], %s568
        %v570 = vld [vmem:[%s569 + $0x8] sm:$0xff]
        %v571 = vld [vmem:[%s569 + $0x18] sm:$0xff]
        %v572 = vld [vmem:[#allocation4] sm:$0xff]
        %v573 = vld [vmem:[#allocation4 + $0x8] sm:$0xff]
        %v574 = vld [vmem:[#allocation4 + $0x10] sm:$0xff]
        %v575 = vld [vmem:[#allocation4 + $0x18] sm:$0xff]
        %576 = vxpose.xlu0.b32.start [1/16] %v572, 128
        %577 = vxpose.xlu0.b32.cont [2/16] %v573, 128
        %578 = vxpose.xlu0.b32.cont [3/16] %v574, 128
        %579 = vxpose.xlu0.b32.cont [4/16] %v575, 128
        %580 = vxpose.xlu0.b32.cont [5/16] 0.0, 128
        %581 = vxpose.xlu0.b32.cont [6/16] 0.0, 128
        %582 = vxpose.xlu0.b32.cont [7/16] 0.0, 128
        %583 = vxpose.xlu0.b32.cont [8/16] 0.0, 128
        %584 = vxpose.xlu0.b32.cont [9/16] 0.0, 128
        %585 = vxpose.xlu0.b32.cont [10/16] 0.0, 128
        %586 = vxpose.xlu0.b32.cont [11/16] 0.0, 128
        %587 = vxpose.xlu0.b32.cont [12/16] 0.0, 128
        %588 = vxpose.xlu0.b32.cont [13/16] 0.0, 128
        %589 = vxpose.xlu0.b32.cont [14/16] 0.0, 128
        %590 = vxpose.xlu0.b32.cont [15/16] 0.0, 128
        %591 = vxpose.xlu0.b32.end [16/16] 0.0, 128
        %v592 = vpop.trf.xlu0
        %v593 = vpop.trf.xlu0
        %v594 = vpop.trf.xlu0
        %v595 = vpop.trf.xlu0
        %v596 = vpop.trf.xlu0
        %v597 = vpop.trf.xlu0
        %v598 = vpop.trf.xlu0
        %v599 = vpop.trf.xlu0
        %v600 = vpop.trf.xlu0
        %v601 = vpop.trf.xlu0
        %v602 = vpop.trf.xlu0
        %v603 = vpop.trf.xlu0
        %v604 = vpop.trf.xlu0
        %v605 = vpop.trf.xlu0
        %v606 = vpop.trf.xlu0
        %v607 = vpop.trf.xlu0
        %609 = vset.pattern.permute.xlu0 127
        %610 = vperm.xlu0 %609, %v570
        %v611 = vpop.permute.xlu0 %610
        %614 = vset.pattern.permute.xlu0 127
        %615 = vperm.xlu0 %614, %v571
        %v616 = vpop.permute.xlu0 %615
        %v618 = vperm.slane %v592, 0
        %v619 = vadd.f32 %v611, %v618
        %v620 = vadd.f32 %v616, %v618
        %v621 = vmul.f32 %v619, 0.2
        %v622 = vmul.f32 %v620, 0.2
        %v623 = vmax.f32 %v619, %v621
        %v624 = vmax.f32 %v620, %v622
        %vm625 = vcmp.gt.f32.partialorder %v563, 0.0
        %vm626 = vcmp.gt.f32.partialorder %v564, 0.0
        %v627 = vsel %vm625, %v623, -1e+30
        %v628 = vsel %vm626, %v624, -1e+30
        %vm629 = vcmask 261120
        %v630 = vsel %vm629, %v627, -inf
        %631 = vmax.xlane.f32.xlu0 %v630
        %v632 = vpop.xlane.xlu0 %631
        %v633 = vsel %vm629, %v628, -inf
        %634 = vmax.xlane.f32.xlu0 %v633
        %v635 = vpop.xlane.xlu0 %634
        %v636 = vsub.f32 %v627, %v632
        %v637 = vsub.f32 %v628, %v635
        %v638 = vmul.f32 %v636, 1.442695
        %v639 = vpow.pop %v638
        %v640 = vmul.f32 %v637, 1.442695
        %v641 = vpow.pop %v640
        %v642 = vmul.f32 %v639, %v563
        %v643 = vmul.f32 %v641, %v564
        %v644 = vsel %vm629, %v642, 0.0
        %645 = vadd.xlane.f32.xlu0 %v644
        %v646 = vpop.xlane.xlu0 %645
        %v647 = vsel %vm629, %v643, 0.0
        %648 = vadd.xlane.f32.xlu0 %v647
        %v649 = vpop.xlane.xlu0 %648
        %vm650 = vcmp.gt.f32.partialorder %v646, 0.0
        %vm651 = vcmp.gt.f32.partialorder %v649, 0.0
        %v652 = vrcp.pop %v646
        %v653 = vmul.f32 %v646, %v652
        %v654 = vsub.f32 1.0, %v653
        %v655 = vmul.f32 %v652, %v654
        %v656 = vadd.f32 %v652, %v655
        %vm657 = vweird.f32 %v646
        %vm658 = vweird.f32 %v652
        %vm659 = vmor %vm657, %vm658
        %v660 = vsel %vm659, %v652, %v656
        %v661 = vand.u32 2147483647, %v646
        %vm662 = vcmp.eq.f32.partialorder %v661, 8.507059e+37
        %v663 = vand.u32 %v646, 2147483648
        %v664 = vor.u32 1.1754944e-38, %v663
        %v665 = vsel %vm662, %v664, %v660
        %v666 = vrcp.pop %v649
        %v667 = vmul.f32 %v649, %v666
        %v668 = vsub.f32 1.0, %v667
        %v669 = vmul.f32 %v666, %v668
        %v670 = vadd.f32 %v666, %v669
        %vm671 = vweird.f32 %v649
        %vm672 = vweird.f32 %v666
        %vm673 = vmor %vm671, %vm672
        %v674 = vsel %vm673, %v666, %v670
        %v675 = vand.u32 2147483647, %v649
        %vm676 = vcmp.eq.f32.partialorder %v675, 8.507059e+37
        %v677 = vand.u32 %v649, 2147483648
        %v678 = vor.u32 1.1754944e-38, %v677
        %v679 = vsel %vm676, %v678, %v674
        %v680 = vsel %vm650, %v665, 0.0
        %v681 = vsel %vm651, %v679, 0.0
        %v682 = vmul.f32 %v642, %v680
        %v683 = vmul.f32 %v643, %v681
        %v684 = vld [vmem:[#allocation2] sm:$0xff]
        %v685 = vld [vmem:[#allocation2 + $0x10] sm:$0xff]
        %v686 = vld [vmem:[#allocation2 + $0x20] sm:$0xff]
        %v687 = vld [vmem:[#allocation2 + $0x30] sm:$0xff]
        %v688 = vlaneseq
        %v689 = vand.u32 %v688, 127
        %vm690 = vcmp.lt.s32.totalorder %v689, 126
        %v691 = vsel %vm690, 1, 0
        %v692 = vcvt.s32.f32 %v691
        %v693 = vmul.f32 %v570, %v692
        %v694 = vmul.f32 %v571, %v692
        %v696 = vsel %vm629, %v682, 0
        %v699 = vsel %vm629, %v683, 0
        %701 = vmatpush.msra.mxu0 0.0
        %702 = vmatpush.msra.mxu0 0.0
        %703 = vmatpush.msra.mxu0 0.0
        %704 = vmatpush.msra.mxu0 0.0
        %705 = vmatpush.msra.mxu0 0.0
        %706 = vmatpush.msra.mxu0 0.0
        %707 = vmatpush.msra.mxu0 0.0
        %708 = vmatpush.msra.mxu0 0.0
        %709 = vmatpush.msra.mxu0 0.0
        %710 = vmatpush.msra.mxu0 0.0
        %711 = vmatpush.msra.mxu0 0.0
        %712 = vmatpush.msra.mxu0 0.0
        %713 = vmatpush.msra.mxu0 %v687
        %714 = vmatpush.msra.mxu0 %v686
        %715 = vmatpush.msra.mxu0 %v685
        %716 = vmatpush.msra.mxu0 %v684
        %717 = vmatmul.f32.gmra.mxu0 %v696
        %v718 = vpop.f32.mrf.mxu0
        %v719 = vadd.f32 %v693, %v718
        %720 = vmatmul.f32.gmra.mxu0 %v699
        %v721 = vpop.f32.mrf.mxu0
        %v722 = vadd.f32 %v694, %v721
        %723 = vdwg.mxu0
        %v724 = vld [vmem:[%s300] sm:$0x1]
        %v726 = vperm.slane %v724, 0
        %v728 = vadd.f32 %v719, %v726
        %v729 = vadd.f32 %v722, %v726
        %p730 = scmp.lt.s32.totalorder %s26, 1
        // Predicated region
        $region61: #{tpu_custom_call.1} parent=35 // pred_check
          %p731 = pneg %p730
        $region62: #{tpu_custom_call.1} parent=35 // pred_check_branch
          %733 = sbr.rel (%p731) target = $region64
        $region63: #{tpu_custom_call.1} parent=35 // pred_region
          %s734 = scalar_lea.vmem [#allocation3], %s560
          %735 = vst [vmem:[%s734] sm:$0xff] %v728
          %736 = vst [vmem:[%s734 + $0x8] sm:$0xff] %v729
          %737 = vst [vmem:[%s296] sm:$0xff] %v728
          %738 = vst [vmem:[%s296 + $0x8] sm:$0xff] %v729
        $region64: #{tpu_custom_call.1} parent=35 // pred_fallthru
          _
        %p739 = scmp.eq.s32.totalorder %s26, 1
        // Predicated region
        $region65: #{tpu_custom_call.1} parent=35 // pred_check
          %p740 = pneg %p739
        $region66: #{tpu_custom_call.1} parent=35 // pred_check_branch
          %742 = sbr.rel (%p740) target = $region68
        $region67: #{tpu_custom_call.1} parent=35 // pred_region
          %v743 = vmul.f32 %v728, %v728
          %v744 = vmul.f32 %v729, %v729
          %745 = vadd.xlane.f32.xlu0 %v743
          %v746 = vpop.xlane.xlu0 %745
          %747 = vadd.xlane.f32.xlu0 %v744
          %v748 = vpop.xlane.xlu0 %747
          %v749 = vmax.f32 %v746, 1e-24
          %v750 = vmax.f32 %v748, 1e-24
          %v751 = vrsqrt.pop %v749
          %v752 = vmul.f32 %v751, %v749
          %v753 = vmul.f32 %v752, %v751
          %v754 = vmul.f32 0.5, %v753
          %v755 = vsub.f32 1.5, %v754
          %v756 = vmul.f32 %v751, %v755
          %vm757 = vweird.f32 %v749
          %vm758 = vweird.f32 %v751
          %vm759 = vmor %vm757, %vm758
          %v760 = vsel %vm759, %v751, %v756
          %v761 = vrsqrt.pop %v750
          %v762 = vmul.f32 %v761, %v750
          %v763 = vmul.f32 %v762, %v761
          %v764 = vmul.f32 0.5, %v763
          %v765 = vsub.f32 1.5, %v764
          %v766 = vmul.f32 %v761, %v765
          %vm767 = vweird.f32 %v750
          %vm768 = vweird.f32 %v761
          %vm769 = vmor %vm767, %vm768
          %v770 = vsel %vm769, %v761, %v766
          %v771 = vmul.f32 %v728, %v760
          %v772 = vmul.f32 %v729, %v770
          %773 = vst [vmem:[%s296] sm:$0xff] %v771
          %774 = vst [vmem:[%s296 + $0x8] sm:$0xff] %v772
        $region68: #{tpu_custom_call.1} parent=35 // pred_fallthru
          _
        %s775 = sand.u32 %s141, 1
        %s776 = scalar_lea.sflag [#allocation7], %s775
        %s777 = sand.u32 %s141, 1
        %s778 = smul.addr %s777, 16
        %s779 = scalar_lea.vmem [#allocation11], %s778
        // Predicated region
        $region69: #{tpu_custom_call.1} parent=35 // pred_check
          %p780 = pneg %p151
        $region70: #{tpu_custom_call.1} parent=35 // pred_check_branch
          %782 = sbr.rel (%p780) target = $region72
        $region71: #{tpu_custom_call.1} parent=35 // pred_region
          %s783 = smul.u32 2, %s27
          %785 = vsyncadd %s776, 0
          %s786 = smul.addr %s783, 8
          %s787 = scalar_lea.hbm %s4, %s786
          %s788 = sshll.u32 %s779, 4
          %s789 = int_to_ptr.vmem [resolvable:$true] %s788
          %s790 = sshll.u32 %s787, 4
          %s791 = int_to_ptr.hbm [resolvable:$true] %s790
          %796 = dma.vmem_to_hbm [thread:$0]  %s789, 256, %s791, %s776, 128, 128, 8
        $region72: #{tpu_custom_call.1} parent=35 // pred_fallthru
          _
      $region36: #{tpu_custom_call.1} parent=5 // pred_fallthru
        _
      %p797 = scmp.le.s32.totalorder 2, %s17
      // Predicated region
      $region73: #{tpu_custom_call.1} parent=5 // pred_check
        %p798 = pneg %p797
      $region74: #{tpu_custom_call.1} parent=5 // pred_check_branch
        %800 = sbr.rel (%p798) target = $region76
      $region75: #{tpu_custom_call.1} parent=5 // pred_region
        %s801 = ssub.s32 %s17, 2
        // Predicated region
        $region77: #{tpu_custom_call.1} parent=75 // pred_check
          %p802 = pneg %p157
        $region78: #{tpu_custom_call.1} parent=75 // pred_check_branch
          %804 = sbr.rel (%p802) target = $region80
        $region79: #{tpu_custom_call.1} parent=75 // pred_region
          %s805 = sand.u32 %s142, 1
          %s806 = scalar_lea.sflag [#allocation7], %s805
          %s807 = sand.u32 %s142, 1
          %s808 = smul.addr %s807, 16
          %s809 = scalar_lea.vmem [#allocation11], %s808
          %811 = dma.done %s806, 256
        $region80: #{tpu_custom_call.1} parent=75 // pred_fallthru
          _
      $region76: #{tpu_custom_call.1} parent=5 // pred_fallthru
        _
    $region6: #{tpu_custom_call.1} parent=1 // loop_footer
      %s21 = sadd.s32 1, %s17
    $region7: #{tpu_custom_call.1} parent=1 // loop_footer_branch
      %16 = sbr.rel target = $region3
    $region8: #{tpu_custom_call.1} parent=1 // loop_exit
      _
    %812 = vsyncpa [#allocation6], 1
    %s813 = scalar_lea.sflag [#allocation6], 1
    %814 = vsyncpa %s813, 1
    %815 = vsyncpa [#allocation9], 1
    %s816 = scalar_lea.sflag [#allocation9], 1
    %817 = vsyncpa %s816, 1
    %818 = vsyncpa [#allocation7], 1
    %s819 = scalar_lea.sflag [#allocation7], 1
    %820 = vsyncpa %s819, 1

</llo_original>
